<compile_context>
chip_gen: v6e
topology: v6e:2x2x1
jax: 0.10.0
libtpu: 0.0.40
codegen_flags: <defaults>
</compile_context>

<pallas_src>
import functools

import jax
import jax.numpy as jnp
from jax.experimental import pallas as pl
from jax.experimental.pallas import tpu as pltpu

ALPHA = 0.25
GAMMA = 2.0   # kernel specializes gamma == 2 (|d|^2 == d*d -> no pow/exp/log)

LANES = 128


def _sublane_align(dtype):
    # Minimal second-minor tile: 8 (4-byte), 16 (2-byte), 32 (1-byte) dtypes.
    return max(8, 32 // jnp.dtype(dtype).itemsize)


def _device_kind():
    try:
        return jax.devices()[0].device_kind.lower()
    except Exception:  # pragma: no cover - defensive only
        return ""


def _focal_loss_kernel(x_ref, y_ref, out_ref, acc_ref, *,
                       rows, tile_rows, tiles_per_core, align,
                       n_full_tiles, needs_mask):
    c = pl.program_id(0)           # "parallel" partial (megacore split on v7x)
    t = pl.program_id(1)           # "arbitrary" reduction sweep

    @pl.when(t == 0)
    def _():
        acc_ref[...] = jnp.zeros_like(acc_ref)

    rb = c * tiles_per_core + t    # logical tile index (may exceed n_tiles-1)

    x = x_ref[...].astype(jnp.float32)   # "probs" == logits in the torch module
    y = y_ref[...].astype(jnp.float32)

    # Folded focal-loss arithmetic (alpha=0.25, gamma=2):
    #   L  = softplus(-|x|) = log1p(exp(-|x|))            (EUP exp + log1p)
    #   s  = a + b = (1-alpha) + (2*alpha - 1)*y
    #   tt = a - b = y - (1-alpha)
    #   loss*coeff = -0.5 * [ tt*x - s*(|x| + 2L) ] * (y - x)^2
    # The -0.5 is folded into the wrapper's final scale.
    ax = jnp.abs(x)
    lse = jnp.log1p(jnp.exp(-ax))
    s = (1.0 - ALPHA) + (2.0 * ALPHA - 1.0) * y
    tt = y - (1.0 - ALPHA)
    d = y - x
    v = (tt * x - s * (ax + 2.0 * lse)) * (d * d)

    def accumulate(vals):
        # (tile_rows, 128) -> (tile_rows/align, align, 128) is tile-layout
        # preserving (free); the axis-0 sum is pure vreg adds into the tiny
        # (align, 128) accumulator.
        acc_ref[...] += jnp.sum(
            vals.reshape(tile_rows // align, align, LANES), axis=0)

    if needs_mask:
        # Only tiles at/after the last fully-in-range tile can contain rows
        # past `rows` (ragged last block and clamped duplicate blocks an idle
        # partial would otherwise double-count).  Everything else takes the
        # mask-free fast path.
        @pl.when(rb < n_full_tiles)
        def _():
            accumulate(v)

        @pl.when(rb >= n_full_tiles)
        def _():
            row = rb * tile_rows + jax.lax.broadcasted_iota(
                jnp.int32, v.shape, 0)
            accumulate(jnp.where(row < rows, v, 0.0))
    else:
        accumulate(v)

    @pl.when(t == pl.num_programs(1) - 1)
    def _():
        out_ref[0, 0] = jnp.sum(acc_ref[...])   # tiny (align,128) reduce


def focal_loss(logits, label, *, reduction="mean", tile_rows=None,
               num_partials=None):
    """Pallas TPU implementation of Focal_Loss(alpha=0.25, gamma=2).forward."""
    assert logits.shape == label.shape
    n = logits.size

    if reduction == "mean":
        denom = float(n)
    elif reduction == "sum":
        denom = 1.0
    else:
        raise NotImplementedError("only 'mean' and 'sum' reductions supported")
        # TODO(synk): reduction='none' needs a full-size elementwise-output kernel.

    kind = _device_kind()
    if num_partials is None:
        # The leading "parallel" axis only pays off with 2 TensorCores (v7x);
        # on 1-TC chips it is a serial loop plus a wasted clamped-block fetch.
        num_partials = 2 if "v7" in kind else 1
    if tile_rows is None:
        # v6e/v7x: 4096 rows -> 2 MiB f32/input, 2 inputs x 2 buffers = 8 MiB
        # plus elementwise-intermediate spills fits the 32 MiB default scoped
        # VMEM.  v5e/unknown: 2048 rows stays inside the 16 MiB default.
        tile_rows = 4096 if ("v7" in kind or "v6" in kind) else 2048

    # Keep input dtypes as-is (bf16 inputs halve HBM traffic on the
    # memory-bound v5e/v6e paths); compute is f32 inside the kernel.
    x = logits.reshape(-1)
    y = label.reshape(-1)

    align = max(_sublane_align(x.dtype), _sublane_align(y.dtype))
    min_block = align * LANES
    n_pad = pl.cdiv(n, min_block) * min_block
    if n_pad != n:
        # Rare ragged case only: small tail pad (zeros contribute exactly 0).
        x = jnp.pad(x, (0, n_pad - n))
        y = jnp.pad(y, (0, n_pad - n))
    rows = n_pad // LANES
    x = x.reshape(rows, LANES)
    y = y.reshape(rows, LANES)

    tr = min(tile_rows, rows)
    tr = max(align, (tr // align) * align)
    n_tiles = pl.cdiv(rows, tr)
    tiles_per_core = pl.cdiv(n_tiles, num_partials)

    # Masking is only required when the last real tile is partial or when an
    # idle partial re-reads a clamped duplicate block; otherwise compile the
    # mask-free specialization.
    n_full_tiles = rows // tr
    needs_mask = (rows % tr != 0) or (n_tiles % num_partials != 0)

    def in_map(c, t):
        # Clamp so idle / ragged blocks never index past the array; the kernel
        # mask (built from the unclamped logical index) zeroes duplicated rows.
        return (jnp.minimum(c * tiles_per_core + t, n_tiles - 1), 0)

    partials = pl.pallas_call(
        functools.partial(_focal_loss_kernel, rows=rows, tile_rows=tr,
                          tiles_per_core=tiles_per_core, align=align,
                          n_full_tiles=n_full_tiles, needs_mask=needs_mask),
        out_shape=jax.ShapeDtypeStruct((num_partials, 1), jnp.float32),
        grid=(num_partials, tiles_per_core),
        in_specs=[
            pl.BlockSpec((tr, LANES), in_map),
            pl.BlockSpec((tr, LANES), in_map),
        ],
        out_specs=pl.BlockSpec((1, 1), lambda c, t: (c, 0),
                               memory_space=pltpu.SMEM),
        scratch_shapes=[pltpu.VMEM((align, LANES), jnp.float32)],
        compiler_params=pltpu.CompilerParams(
            dimension_semantics=("parallel", "arbitrary")),
    )(x, y)

    # Kernel accumulates v = -2 * loss * coeff; fold the -0.5 and the mean
    # denominator into one final scale.
    return jnp.sum(partials) * jnp.float32(-0.5 / denom)


def _focal_loss_ref(logits, label, alpha=ALPHA, gamma=GAMMA, reduction="mean"):
    """Pure-JAX reference mirroring the PyTorch forward pass."""
    x = logits.astype(jnp.float32)
    y = label.astype(jnp.float32)
    coeff = -jnp.power(jnp.abs(y - x), gamma)
    log_probs = jnp.where(x >= 0, -jnp.log1p(jnp.exp(-x)), x - jnp.log1p(jnp.exp(x)))
    log_1_probs = jnp.where(x >= 0, -x - jnp.log1p(jnp.exp(-x)), -jnp.log1p(jnp.exp(x)))
    loss = y * alpha * log_probs + (1.0 - y) * (1.0 - alpha) * log_1_probs
    loss = loss * coeff
    if reduction == "mean":
        return loss.mean()
    if reduction == "sum":
        return loss.sum()
    return loss


if __name__ == "__main__":
    key = jax.random.PRNGKey(0)
    ks = jax.random.split(key, 6)

    # Small NCHW inputs consistent with the module's docstring usage.
    B, C, H, W = 2, 4, 16, 16
    logits = jax.random.normal(ks[0], (B, C, H, W), dtype=jnp.float32)
    label = jax.random.bernoulli(ks[1], 0.5, (B, C, H, W)).astype(jnp.float32)

    loss = jax.block_until_ready(focal_loss(logits, label, reduction="mean"))
    ref = _focal_loss_ref(logits, label, reduction="mean")
    assert jnp.allclose(loss, ref, rtol=1e-5, atol=1e-5), (loss, ref)

    loss_s = jax.block_until_ready(focal_loss(logits, label, reduction="sum"))
    ref_s = _focal_loss_ref(logits, label, reduction="sum")
    assert jnp.allclose(loss_s, ref_s, rtol=1e-4, atol=1e-3), (loss_s, ref_s)

    # Ragged n (not a multiple of 8*128) exercises the zero-pad tail path.
    shp = (3, 5, 7, 11)
    logits2 = jax.random.normal(ks[2], shp, dtype=jnp.float32)
    label2 = jax.random.bernoulli(ks[3], 0.5, shp).astype(jnp.float32)
    loss2 = jax.block_until_ready(focal_loss(logits2, label2, reduction="mean"))
    ref2 = _focal_loss_ref(logits2, label2, reduction="mean")
    assert jnp.allclose(loss2, ref2, rtol=1e-5, atol=1e-5), (loss2, ref2)

    # Partial last tile (rows=24, tr=16) -> masked boundary-tile pl.when path.
    shp3 = (5, 5, 11, 11)
    logits3 = jax.random.normal(ks[4], shp3, dtype=jnp.float32)
    label3 = jax.random.bernoulli(ks[5], 0.5, shp3).astype(jnp.float32)
    ref3 = _focal_loss_ref(logits3, label3, reduction="mean")
    loss3 = jax.block_until_ready(
        focal_loss(logits3, label3, reduction="mean", tile_rows=16,
                   num_partials=2))
    assert jnp.allclose(loss3, ref3, rtol=1e-5, atol=1e-5), (loss3, ref3)

    # Clamped duplicate block (n_tiles=1 < num_partials=2) -> fully masked.
    loss4 = jax.block_until_ready(
        focal_loss(logits3, label3, reduction="mean", tile_rows=24,
                   num_partials=2))
    assert jnp.allclose(loss4, ref3, rtol=1e-5, atol=1e-5), (loss4, ref3)

    # bf16 inputs pass through (halved HBM traffic); compute stays f32.
    loss5 = jax.block_until_ready(
        focal_loss(logits.astype(jnp.bfloat16), label.astype(jnp.bfloat16)))
    ref5 = _focal_loss_ref(logits.astype(jnp.bfloat16),
                           label.astype(jnp.bfloat16))
    assert jnp.allclose(loss5, ref5, rtol=1e-5, atol=1e-5), (loss5, ref5)

    print("KERNEL_OK")
</pallas_src>

<mosaic_0001>
module attributes {stable_mosaic.version = 11 : i64} {
  func.func @_focal_loss_kernel(%arg0: i32, %arg1: i32, %arg2: memref<16x128xf32, #tpu.memory_space<vmem>>, %arg3: memref<16x128xf32, #tpu.memory_space<vmem>>, %arg4: memref<1x1xf32, #tpu.memory_space<smem>>, %arg5: memref<8x128xf32, #tpu.memory_space<vmem>>) attributes {dimension_semantics = [#tpu.dimension_semantics<parallel>, #tpu.dimension_semantics<arbitrary>], iteration_bounds = array<i64: 1, 1>, scalar_prefetch = 0 : i64, scratch_operands = 1 : i64, tpu.core_type = #tpu.core_type<tc>, window_params = [{transform_indices = @transform_0, window_bounds = array<i64: 16, 128>}, {transform_indices = @transform_1, window_bounds = array<i64: 16, 128>}, {transform_indices = @transform_2, window_bounds = array<i64: 1, 1>}]} {
    %c0_i32 = arith.constant 0 : i32
    %0 = arith.cmpi eq, %arg1, %c0_i32 : i32
    %1 = arith.extui %0 : i1 to i32
    %c0_i32_0 = arith.constant 0 : i32
    %2 = arith.cmpi ne, %1, %c0_i32_0 : i32
    scf.if %2 {
      %cst_15 = arith.constant 0.000000e+00 : f32
      %33 = vector.broadcast %cst_15 : f32 to vector<8x128xf32>
      %c0_16 = arith.constant 0 : index
      %c0_17 = arith.constant 0 : index
      %34 = vector.load %arg5[%c0_16, %c0_17] : memref<8x128xf32, #tpu.memory_space<vmem>>, vector<8x128xf32>
      tpu.vector_store %arg5[%c0_16, %c0_17], %33 {strides = array<i32>} : memref<8x128xf32, #tpu.memory_space<vmem>>, vector<8x128xf32>,
    } else {
    }
    %c0 = arith.constant 0 : index
    %c0_1 = arith.constant 0 : index
    %3 = vector.load %arg2[%c0, %c0_1] : memref<16x128xf32, #tpu.memory_space<vmem>>, vector<16x128xf32>
    %c0_2 = arith.constant 0 : index
    %c0_3 = arith.constant 0 : index
    %4 = vector.load %arg3[%c0_2, %c0_3] : memref<16x128xf32, #tpu.memory_space<vmem>>, vector<16x128xf32>
    %5 = math.absf %3 : vector<16x128xf32>
    %cst = arith.constant 0.000000e+00 : f32
    %6 = vector.broadcast %cst : f32 to vector<16x128xf32>
    %7 = arith.subf %6, %5 : vector<16x128xf32>
    %8 = math.exp %7 : vector<16x128xf32>
    %9 = math.log1p %8 : vector<16x128xf32>
    %cst_4 = arith.constant -5.000000e-01 : f32
    %10 = vector.broadcast %cst_4 : f32 to vector<16x128xf32>
    %11 = arith.mulf %10, %4 : vector<16x128xf32>
    %cst_5 = arith.constant 7.500000e-01 : f32
    %12 = vector.broadcast %cst_5 : f32 to vector<16x128xf32>
    %13 = arith.addf %12, %11 : vector<16x128xf32>
    %cst_6 = arith.constant 7.500000e-01 : f32
    %14 = vector.broadcast %cst_6 : f32 to vector<16x128xf32>
    %15 = arith.subf %4, %14 : vector<16x128xf32>
    %16 = arith.subf %4, %3 : vector<16x128xf32>
    %17 = arith.mulf %15, %3 : vector<16x128xf32>
    %cst_7 = arith.constant 2.000000e+00 : f32
    %18 = vector.broadcast %cst_7 : f32 to vector<16x128xf32>
    %19 = arith.mulf %18, %9 : vector<16x128xf32>
    %20 = arith.addf %5, %19 : vector<16x128xf32>
    %21 = arith.mulf %13, %20 : vector<16x128xf32>
    %22 = arith.subf %17, %21 : vector<16x128xf32>
    %23 = arith.mulf %16, %16 : vector<16x128xf32>
    %24 = arith.mulf %22, %23 : vector<16x128xf32>
    %c0_8 = arith.constant 0 : index
    %c0_9 = arith.constant 0 : index
    %25 = vector.load %arg5[%c0_8, %c0_9] : memref<8x128xf32, #tpu.memory_space<vmem>>, vector<8x128xf32>
    %26 = vector.shape_cast %24 : vector<16x128xf32> to vector<2x8x128xf32>
    %cst_10 = arith.constant dense<0.000000e+00> : vector<8x128xf32>
    %27 = vector.multi_reduction <add>, %26, %cst_10 [0] : vector<2x8x128xf32> to vector<8x128xf32>
    %28 = arith.addf %25, %27 : vector<8x128xf32>
    %c0_11 = arith.constant 0 : index
    %c0_12 = arith.constant 0 : index
    %29 = vector.load %arg5[%c0_11, %c0_12] : memref<8x128xf32, #tpu.memory_space<vmem>>, vector<8x128xf32>
    tpu.vector_store %arg5[%c0_11, %c0_12], %28 {strides = array<i32>} : memref<8x128xf32, #tpu.memory_space<vmem>>, vector<8x128xf32>,
    %c0_i32_13 = arith.constant 0 : i32
    %30 = arith.cmpi eq, %arg1, %c0_i32_13 : i32
    %31 = arith.extui %30 : i1 to i32
    %c0_i32_14 = arith.constant 0 : i32
    %32 = arith.cmpi ne, %31, %c0_i32_14 : i32
    scf.if %32 {
      %c0_15 = arith.constant 0 : index
      %c0_16 = arith.constant 0 : index
      %33 = vector.load %arg5[%c0_15, %c0_16] : memref<8x128xf32, #tpu.memory_space<vmem>>, vector<8x128xf32>
      %34 = vector.shape_cast %33 : vector<8x128xf32> to vector<1x8x128xf32>
      %cst_17 = arith.constant dense<0.000000e+00> : vector<1xf32>
      %35 = vector.multi_reduction <add>, %34, %cst_17 [1, 2] : vector<1x8x128xf32> to vector<1xf32>
      %36 = vector.shape_cast %35 : vector<1xf32> to vector<1x1x1xf32>
      %37 = vector.extract %36[0, 0, 0] : f32 from vector<1x1x1xf32>
      %c0_18 = arith.constant 0 : index
      %c0_19 = arith.constant 0 : index
      %38 = memref.load %arg4[%c0_18, %c0_19] : memref<1x1xf32, #tpu.memory_space<smem>>
      memref.store %37, %arg4[%c0_18, %c0_19] : memref<1x1xf32, #tpu.memory_space<smem>>
    } else {
    }
    return
  }
  func.func @transform_0(%arg0: i32, %arg1: i32) -> (i32, i32) {
    %c1_i32 = arith.constant 1 : i32
    %0 = arith.muli %arg0, %c1_i32 : i32
    %1 = arith.addi %0, %arg1 : i32
    %c0_i32 = arith.constant 0 : i32
    %2 = arith.minsi %1, %c0_i32 : i32
    %c0_i32_0 = arith.constant 0 : i32
    %c0_i32_1 = arith.constant 0 : i32
    return %2, %c0_i32_0 : i32, i32
  }
  func.func @transform_1(%arg0: i32, %arg1: i32) -> (i32, i32) {
    %c1_i32 = arith.constant 1 : i32
    %0 = arith.muli %arg0, %c1_i32 : i32
    %1 = arith.addi %0, %arg1 : i32
    %c0_i32 = arith.constant 0 : i32
    %2 = arith.minsi %1, %c0_i32 : i32
    %c0_i32_0 = arith.constant 0 : i32
    %c0_i32_1 = arith.constant 0 : i32
    return %2, %c0_i32_0 : i32, i32
  }
  func.func @transform_2(%arg0: i32, %arg1: i32) -> (i32, i32) {
    %c0_i32 = arith.constant 0 : i32
    %c0_i32_0 = arith.constant 0 : i32
    return %arg0, %c0_i32 : i32, i32
  }
}

</mosaic_0001>

<llo_original>
// kernel: tpu_custom_call.1
$region0: #{tpu_custom_call.1}
  #allocation0 [shape = 'u32[]', space=smem, size = 0x4, offset = 0x4, fixed_abs, tag = 'smem constant byte address 0x4 - core index']
  #allocation1 [shape = 'u32[144,128]{1,0:T(1,128)}', space=vmem, size = 0x12000, scoped, tag = 'internal scratch']
  #allocation2 [shape = 'f32[8,128]{1,0:T(8,128)}', space=vmem, size = 0x1000, scoped, tag = 'scratch operand']
  %s0 = inlined_call_operand.hbm [shape: f32[16,128], index: 0, kind: input, shape index: {}]
  %s1 = inlined_call_operand.hbm [shape: f32[16,128], index: 1, kind: input, shape index: {}]
  %s2 = inlined_call_operand.hbm [shape: f32[1,1], index: 2, kind: output, shape index: {}]
  %s3 = sld [smem:[#allocation0]]
  $region34: #{tpu_custom_call.1} parent=0
    _
  %s5 = ssub.s32 1, %s3
  %s6 = scalar_select 0, %s5, %s3
  $region1: #{tpu_custom_call.1} parent=0
    #allocation3 [shape = 'u8[8192]{0}', space=vmem, size = 0x2000, scoped, tag = 'input window, operand 0, single buffered']
    #allocation4 [shape = 's32[1]{0}', space=sflag, size = 0x4, scoped, tag = 'scoped memory for tpu_custom_call.1']
    #allocation5 [shape = 's32[1]{0}', space=sflag, size = 0x4, scoped, tag = 'scoped memory for tpu_custom_call.1']
    #allocation6 [shape = 'u8[8192]{0}', space=vmem, size = 0x2000, scoped, tag = 'input window, operand 1, single buffered']
    #allocation7 [shape = 's32[1]{0}', space=sflag, size = 0x4, scoped, tag = 'scoped memory for tpu_custom_call.1']
    #allocation8 [shape = 'u8[512]{0}', space=smem, size = 0x200, scoped, tag = 'output window, operand 0, single buffered']
    %7 = vsyncpa [#allocation4], 0
    %8 = vsyncpa [#allocation7], 0
    %9 = vsyncpa [#allocation5], 0
    // Predicated region
    $region2: #{tpu_custom_call.1} parent=1 // pred_check
      _
    $region3: #{tpu_custom_call.1} parent=1 // pred_check_branch
      %11 = sbr.rel (0) target = $region5
    $region4: #{tpu_custom_call.1} parent=1 // pred_region
      %s12 = sadd.s32 0, 0
      %p13 = scmp.lt.s32.totalorder %s12, 0
      %s14 = scalar_select %p13, %s12, 0
      %s15 = smul.u32 2, %s14
      %s17 = ssub.s32 256, 256
      %18 = vsyncadd [#allocation4], %s17
      %s19 = smul.addr %s15, 128
      %s20 = scalar_lea.hbm %s0, %s19
      %s21 = sshll.u32 [#allocation3], 4
      %s22 = int_to_ptr.vmem [resolvable:$true] %s21
      %27 = dma.hbm_to_vmem [thread:$0]  %s20, 256, %s22, [#allocation4], 128, 128, 8
    $region5: #{tpu_custom_call.1} parent=1 // pred_fallthru
      _
    // Predicated region
    $region6: #{tpu_custom_call.1} parent=1 // pred_check
      _
    $region7: #{tpu_custom_call.1} parent=1 // pred_check_branch
      %29 = sbr.rel (0) target = $region9
    $region8: #{tpu_custom_call.1} parent=1 // pred_region
      %s30 = sadd.s32 0, 0
      %p31 = scmp.lt.s32.totalorder %s30, 0
      %s32 = scalar_select %p31, %s30, 0
      %s33 = smul.u32 2, %s32
      %s35 = ssub.s32 256, 256
      %36 = vsyncadd [#allocation7], %s35
      %s37 = smul.addr %s33, 128
      %s38 = scalar_lea.hbm %s1, %s37
      %s39 = sshll.u32 [#allocation6], 4
      %s40 = int_to_ptr.vmem [resolvable:$true] %s39
      %45 = dma.hbm_to_vmem [thread:$0]  %s38, 256, %s40, [#allocation7], 128, 128, 8
    $region9: #{tpu_custom_call.1} parent=1 // pred_fallthru
      _
    // Predicated region
    $region10: #{tpu_custom_call.1} parent=1 // pred_check
      _
    $region11: #{tpu_custom_call.1} parent=1 // pred_check_branch
      %47 = sbr.rel (0) target = $region13
    $region12: #{tpu_custom_call.1} parent=1 // pred_region
      %48 = dma.done [#allocation4], 256
    $region13: #{tpu_custom_call.1} parent=1 // pred_fallthru
      _
    // Predicated region
    $region14: #{tpu_custom_call.1} parent=1 // pred_check
      _
    $region15: #{tpu_custom_call.1} parent=1 // pred_check_branch
      %50 = sbr.rel (0) target = $region17
    $region16: #{tpu_custom_call.1} parent=1 // pred_region
      %51 = dma.done [#allocation7], 256
    $region17: #{tpu_custom_call.1} parent=1 // pred_fallthru
      _
    %s52 = sadd.s32 0, 0
    %p53 = scmp.lt.s32.totalorder %s52, 0
    %s54 = scalar_select %p53, %s52, 0
    %s55 = smul.u32 2, %s54
    %s56 = sadd.s32 0, 0
    %p57 = scmp.lt.s32.totalorder %s56, 0
    %s58 = scalar_select %p57, %s56, 0
    %s59 = smul.u32 2, %s58
    %p60 = scmp.eq.s32.totalorder 0, 0
    // Predicated region
    $region18: #{tpu_custom_call.1} parent=1 // pred_check
      %p61 = pneg %p60
    $region19: #{tpu_custom_call.1} parent=1 // pred_check_branch
      %63 = sbr.rel (%p61) target = $region21
    $region20: #{tpu_custom_call.1} parent=1 // pred_region
      %64 = vst [vmem:[#allocation2] sm:$0xff] 0.0
    $region21: #{tpu_custom_call.1} parent=1 // pred_fallthru
      _
    %v65 = vld [vmem:[#allocation3] sm:$0xff]
    %v66 = vld [vmem:[#allocation3 + $0x8] sm:$0xff]
    %v67 = vld [vmem:[#allocation6] sm:$0xff]
    %v68 = vld [vmem:[#allocation6 + $0x8] sm:$0xff]
    %v69 = vand.u32 2147483647, %v65
    %v70 = vand.u32 2147483647, %v66
    %v71 = vsub.f32 0.0, %v69
    %v72 = vsub.f32 0.0, %v70
    %v73 = vmul.f32 %v71, 1.442695
    %v74 = vpow.pop %v73
    %v75 = vmul.f32 %v72, 1.442695
    %v76 = vpow.pop %v75
    %v77 = vadd.f32 %v74, 1.0
    %v78 = vlog2.pop %v77
    %v79 = vmul.f32 %v78, 0.6931472
    %v80 = vmul.f32 -0.5, %v74
    %v81 = vadd.f32 %v80, 1.0
    %v82 = vmul.f32 %v81, %v74
    %v83 = vand.u32 2147483647, %v74
    %vm84 = vcmp.lt.f32.partialorder %v83, 0.0004427343
    %v85 = vsel %vm84, %v82, %v79
    %v86 = vadd.f32 %v76, 1.0
    %v87 = vlog2.pop %v86
    %v88 = vmul.f32 %v87, 0.6931472
    %v89 = vmul.f32 -0.5, %v76
    %v90 = vadd.f32 %v89, 1.0
    %v91 = vmul.f32 %v90, %v76
    %v92 = vand.u32 2147483647, %v76
    %vm93 = vcmp.lt.f32.partialorder %v92, 0.0004427343
    %v94 = vsel %vm93, %v91, %v88
    %v95 = vmul.f32 %v67, -0.5
    %v96 = vmul.f32 %v68, -0.5
    %v97 = vadd.f32 %v95, 0.75
    %v98 = vadd.f32 %v96, 0.75
    %v99 = vsub.f32 %v67, 0.75
    %v100 = vsub.f32 %v68, 0.75
    %v101 = vsub.f32 %v67, %v65
    %v102 = vsub.f32 %v68, %v66
    %v103 = vmul.f32 %v99, %v65
    %v104 = vmul.f32 %v100, %v66
    %v105 = vmul.f32 %v85, 2.0
    %v106 = vmul.f32 %v94, 2.0
    %v107 = vadd.f32 %v69, %v105
    %v108 = vadd.f32 %v70, %v106
    %v109 = vmul.f32 %v97, %v107
    %v110 = vmul.f32 %v98, %v108
    %v111 = vsub.f32 %v103, %v109
    %v112 = vsub.f32 %v104, %v110
    %v113 = vmul.f32 %v101, %v101
    %v114 = vmul.f32 %v102, %v102
    %v115 = vmul.f32 %v111, %v113
    %v116 = vmul.f32 %v112, %v114
    %v117 = vld [vmem:[#allocation2] sm:$0xff]
    %v118 = vadd.f32 %v115, %v116
    %v119 = vadd.f32 %v117, %v118
    %120 = vst [vmem:[#allocation2] sm:$0xff] %v119
    // Predicated region
    $region22: #{tpu_custom_call.1} parent=1 // pred_check
      %p121 = pneg %p60
    $region23: #{tpu_custom_call.1} parent=1 // pred_check_branch
      %123 = sbr.rel (%p121) target = $region25
    $region24: #{tpu_custom_call.1} parent=1 // pred_region
      %v124 = vld [vmem:[#allocation2] sm:$0xff]
      %125 = vadd.xlane.f32.xlu0 %v124
      %v126 = vpop.xlane.xlu0 %125
      %v127 = vrot.slane %v126, 4
      %v128 = vadd.f32 %v126, %v127
      %v129 = vrot.slane %v128, 2
      %v130 = vadd.f32 %v128, %v129
      %v131 = vrot.slane %v130, 1
      %v132 = vadd.f32 %v130, %v131
      %s133 = vtos %v132
      %s134 = scalar_lea.smem [#allocation8], 0
      %135 = sst [smem:[%s134]] %s133
    $region25: #{tpu_custom_call.1} parent=1 // pred_fallthru
      _
    // Predicated region
    $region26: #{tpu_custom_call.1} parent=1 // pred_check
      _
    $region27: #{tpu_custom_call.1} parent=1 // pred_check_branch
      %137 = sbr.rel (0) target = $region29
    $region28: #{tpu_custom_call.1} parent=1 // pred_region
      %s139 = ssub.s32 16, 16
      %140 = vsyncadd [#allocation5], %s139
      %143 = dma.smem_to_hbm [#allocation8], 16, %s2, [#allocation5]
    $region29: #{tpu_custom_call.1} parent=1 // pred_fallthru
      _
    // Predicated region
    $region30: #{tpu_custom_call.1} parent=1 // pred_check
      _
    $region31: #{tpu_custom_call.1} parent=1 // pred_check_branch
      %145 = sbr.rel (0) target = $region33
    $region32: #{tpu_custom_call.1} parent=1 // pred_region
      %146 = dma.done [#allocation5], 16
    $region33: #{tpu_custom_call.1} parent=1 // pred_fallthru
      _
    %147 = sfence
    %148 = vsyncpa [#allocation4], 1
    %149 = vsyncpa [#allocation7], 1
    %150 = vsyncpa [#allocation5], 1

</llo_original>
